<compile_context>
chip_gen: v5e
topology: v5e:2x2
jax: 0.10.0
libtpu: 0.0.40
codegen_flags: <defaults>
</compile_context>

<pallas_src>
import functools

import numpy as np
import jax
import jax.numpy as jnp
from jax.experimental import pallas as pl
from jax.experimental.pallas import tpu as pltpu

# ---------------- model hyper-parameters (small, consistent with the module) ----
HIDDEN_DIM = 32
ATTN_DIM = 16
N_REL = 4
N_LAYER = 3
N_ENT = 32
BATCH = 2
TOPK = 8          # module hardcodes 100; clamped to fit the small synthetic entity set
DROPOUT = 0.1     # TODO(synk): nn.Dropout treated as eval() identity here.

TE_MAX = 1024     # edge-tile upper bound (bigger tile -> fewer grid steps; VMEM is tiny)


# ------------------------------ fused per-layer Pallas kernel -------------------
def _layer_kernel(obj_ref, hs_ref, hr_ref, hqr_ref, wcat_ref, bqr_ref, wa_ref,
                  wh_ref, h0_ref, wih_ref, whh_ref, bih_ref, bhh_ref, wproj_ref,
                  hid_ref, proj_ref, *, n_edge, te):
    """One GNN layer: edge attention+message -> scatter-sum -> W_h+ReLU -> GRU -> proj.

    Grid axis 0 iterates edge tiles (reduction axis, 'arbitrary'); the output
    blocks have a constant block index over it, so hid_ref stays VMEM-resident
    and is used directly as the scatter accumulator.
    """
    k = pl.program_id(0)

    @pl.when(k == 0)
    def _():
        hid_ref[...] = jnp.zeros_like(hid_ref)

    # ---- per-edge attention + gated message (edge tile k) ----
    hs = hs_ref[...]                                   # (te, D)
    hr = hr_ref[...]
    hqr = hqr_ref[...]
    # Fused attention: one (te, 3D) @ (3D, A) MXU pass instead of three K=D passes.
    # (For strict f32 parity with PyTorch, precision=jax.lax.Precision.HIGHEST
    #  could be added to the dots.)
    x_cat = jnp.concatenate([hs, hr, hqr], axis=-1)    # (te, 3D)
    att = jnp.dot(x_cat, wcat_ref[...],
                  preferred_element_type=jnp.float32) + bqr_ref[...]
    att = jnp.maximum(att, 0.0)                        # ReLU
    # alpha via VPU multiply + XLU lane reduce (avoids an N=1 MXU pass).
    alpha = jax.nn.sigmoid(
        jnp.sum(att * wa_ref[...], axis=-1, keepdims=True))       # (te, 1)
    msg = (hs + hr) * alpha                            # (te, D)

    if n_edge % te != 0:                               # mask the ragged last tile
        row = jax.lax.broadcasted_iota(jnp.int32, (te, 1), 0)
        msg = jnp.where(k * te + row < n_edge, msg, 0.0)

    # ---- scatter-sum by destination node: one-hot (n_node, te) matmul ----
    n_node = hid_ref.shape[0]
    node_ids = jax.lax.broadcasted_iota(jnp.int32, (n_node, te), 0)
    onehot = (node_ids == obj_ref[...]).astype(jnp.float32)        # (n_node, te)
    hid_ref[...] += jnp.dot(onehot, msg, preferred_element_type=jnp.float32)

    # ---- epilogue on the last edge tile: W_h + ReLU, GRU step, projection ----
    @pl.when(k == pl.num_programs(0) - 1)
    def _():
        agg = hid_ref[...]                                         # message_agg
        x = jnp.maximum(
            jnp.dot(agg, wh_ref[...], preferred_element_type=jnp.float32), 0.0)
        h0 = h0_ref[...]
        d = h0.shape[-1]
        # fused GRU gates [r | z | n]: two K=D, N=3D matmuls (PyTorch gate math)
        gi = jnp.dot(x, wih_ref[...],
                     preferred_element_type=jnp.float32) + bih_ref[...]
        gh = jnp.dot(h0, whh_ref[...],
                     preferred_element_type=jnp.float32) + bhh_ref[...]
        r = jax.nn.sigmoid(gi[:, :d] + gh[:, :d])
        z = jax.nn.sigmoid(gi[:, d:2 * d] + gh[:, d:2 * d])
        n = jnp.tanh(gi[:, 2 * d:] + r * gh[:, 2 * d:])
        h_new = (1.0 - z) * n + z * h0
        hid_ref[...] = h_new
        # width-1 projection fused as epilogue (Ws_layers[i] or W_final)
        proj_ref[...] = jnp.dot(h_new, wproj_ref[...],
                                preferred_element_type=jnp.float32)


def adaprop_layer(lp, gru, w_proj, q_rel, hidden, edges, n_node, h0):
    """Run one fused AdaProp layer (GNN + GRU + projection) as a single pallas_call."""
    sub = edges[:, 4]
    rel = edges[:, 2]
    obj = edges[:, 5]
    r_idx = edges[:, 0]
    # gathers have data-dependent index sets -> host/XLA glue
    hs = hidden[sub]                                   # (E, D)
    rela = lp["rela_embed"]
    hr = rela[rel]                                     # (E, D)
    hqr = rela[np.asarray(q_rel)][r_idx]               # (E, D)

    E, D = hs.shape
    E = int(E)
    A = lp["W_cat"].shape[1]
    te = min(TE_MAX, E)                                # full-extent block when E tiny
    obj2d = jnp.asarray(obj, jnp.int32)[None, :]       # (1, E)

    hid_new, proj = pl.pallas_call(
        functools.partial(_layer_kernel, n_edge=E, te=te),
        out_shape=(jax.ShapeDtypeStruct((n_node, D), jnp.float32),
                   jax.ShapeDtypeStruct((n_node, 1), jnp.float32)),
        grid=(pl.cdiv(E, te),),
        in_specs=[
            pl.BlockSpec((1, te), lambda k: (0, k)),           # obj indices
            pl.BlockSpec((te, D), lambda k: (k, 0)),           # hs
            pl.BlockSpec((te, D), lambda k: (k, 0)),           # hr
            pl.BlockSpec((te, D), lambda k: (k, 0)),           # h_qr
            pl.BlockSpec((3 * D, A), lambda k: (0, 0)),        # W_cat = [Ws;Wr;Wqr]
            pl.BlockSpec((1, A), lambda k: (0, 0)),            # bqr
            pl.BlockSpec((1, A), lambda k: (0, 0)),            # W_attn (row)
            pl.BlockSpec((D, D), lambda k: (0, 0)),            # W_h
            pl.BlockSpec((n_node, D), lambda k: (0, 0)),       # h0
            pl.BlockSpec((D, 3 * D), lambda k: (0, 0)),        # GRU w_ih
            pl.BlockSpec((D, 3 * D), lambda k: (0, 0)),        # GRU w_hh
            pl.BlockSpec((1, 3 * D), lambda k: (0, 0)),        # GRU b_ih
            pl.BlockSpec((1, 3 * D), lambda k: (0, 0)),        # GRU b_hh
            pl.BlockSpec((D, 1), lambda k: (0, 0)),            # projection weight
        ],
        out_specs=[
            pl.BlockSpec((n_node, D), lambda k: (0, 0)),       # new hidden (GRU out)
            pl.BlockSpec((n_node, 1), lambda k: (0, 0)),       # per-node logit
        ],
        compiler_params=pltpu.CompilerParams(
            dimension_semantics=("arbitrary",)),               # reduction axis
    )(obj2d, hs, hr, hqr, lp["W_cat"], lp["bqr_attn"], lp["W_attn_row"],
      lp["W_h"], h0, gru["w_ih"], gru["w_hh"], gru["b_ih"], gru["b_hh"], w_proj)
    return hid_new, proj[:, 0]


# ------------------------------ model glue (host-side) --------------------------
def init_params(key):
    keys = iter(jax.random.split(key, 64))

    def nrm(shape, scale=0.1):
        return scale * jax.random.normal(next(keys), shape, jnp.float32)

    layers = []
    for _ in range(N_LAYER):
        layers.append(dict(
            rela_embed=nrm((2 * N_REL + 1, HIDDEN_DIM)),
            # [Ws_attn; Wr_attn; Wqr_attn] stacked (transposed) so that
            # att = [hs|hr|hqr] @ W_cat  ==  Ws(hs) + Wr(hr) + Wqr(hqr)
            W_cat=nrm((3 * HIDDEN_DIM, ATTN_DIM)),
            bqr_attn=nrm((1, ATTN_DIM)),
            W_attn_row=nrm((1, ATTN_DIM)),        # W_attn as row; alpha via VPU reduce
            W_h=nrm((HIDDEN_DIM, HIDDEN_DIM)),
        ))
    Ws_layers = [nrm((HIDDEN_DIM, 1)) for _ in range(N_LAYER)]
    gru = dict(                                   # PyTorch GRU weights, gate order
        w_ih=nrm((HIDDEN_DIM, 3 * HIDDEN_DIM)),   # [r|z|n], stored transposed and
        w_hh=nrm((HIDDEN_DIM, 3 * HIDDEN_DIM)),   # concatenated: x @ w == x @ W^T
        b_ih=nrm((1, 3 * HIDDEN_DIM)),
        b_hh=nrm((1, 3 * HIDDEN_DIM)),
    )
    W_final = nrm((HIDDEN_DIM, 1))
    return dict(layers=layers, Ws_layers=Ws_layers, gru=gru, W_final=W_final)


def build_kg(rng):
    facts = []
    for e in range(N_ENT):                                  # ring ensures connectivity
        facts.append((e, e % N_REL, (e + 1) % N_ENT))
    for _ in range(2 * N_ENT):
        h = int(rng.integers(N_ENT))
        t = int(rng.integers(N_ENT))
        r = int(rng.integers(N_REL))
        if h != t:
            facts.append((h, r, t))
    facts = np.array(sorted(set(facts)), dtype=np.int64)
    inv = np.stack([facts[:, 2], facts[:, 1] + N_REL, facts[:, 0]], 1)
    selfloop = np.stack([np.arange(N_ENT), np.full(N_ENT, 2 * N_REL),
                         np.arange(N_ENT)], 1).astype(np.int64)
    KG = np.concatenate([facts, inv, selfloop], 0)
    M_sub = np.zeros((KG.shape[0], N_ENT), dtype=np.float64)  # dense stand-in for csr M_sub
    M_sub[np.arange(KG.shape[0]), KG[:, 0]] = 1.0
    return KG, M_sub


def get_neighbors(nodes, KG, M_sub, n_ent):
    # TODO(synk): scipy csr_matrix / np.nonzero / torch.unique graph sampling has
    # data-dependent shapes; done host-side in numpy (semantically equivalent).
    node_1hot = np.zeros((n_ent, nodes.shape[0]), dtype=np.float64)
    np.add.at(node_1hot, (nodes[:, 1], nodes[:, 0]), 1.0)
    edge_1hot = M_sub @ node_1hot
    fact_idx, batch_idx = np.nonzero(edge_1hot)
    sampled_edges = np.concatenate([batch_idx[:, None], KG[fact_idx]], axis=1)  # [b,h,r,t]
    head_nodes, head_index = np.unique(sampled_edges[:, [0, 1]], axis=0,
                                       return_inverse=True)
    tail_nodes, tail_index = np.unique(sampled_edges[:, [0, 3]], axis=0,
                                       return_inverse=True)
    head_index = head_index.reshape(-1)
    tail_index = tail_index.reshape(-1)
    mask = sampled_edges[:, 2] == 2 * N_REL
    old_idx = np.argsort(head_index[mask], kind="stable")
    old_nodes_new_idx = tail_index[mask][old_idx]
    sampled_edges = np.concatenate(
        [sampled_edges, head_index[:, None], tail_index[:, None]], axis=1)
    return tail_nodes, sampled_edges, old_nodes_new_idx


def soft_to_hard(proj_all, nodes, n_ent, batch_size, old_nodes_new_idx):
    """Top-k node filtering.  proj_all = Ws_layers[i](hidden) for ALL nodes
    (computed in the fused kernel); forward value identical to projecting the
    diff-node subset.  Returns the boolean keep mask."""
    n_node = nodes.shape[0]
    bool_diff = np.ones(n_node, dtype=bool)
    bool_diff[np.asarray(old_nodes_new_idx)] = False
    bool_same = ~bool_diff
    diff_idx = np.nonzero(bool_diff)[0]
    diff_nodes = nodes[diff_idx]
    diff_logits = proj_all[diff_idx]
    soft_all = jnp.full((batch_size, n_ent), -jnp.inf, jnp.float32)
    soft_all = soft_all.at[diff_nodes[:, 0], diff_nodes[:, 1]].set(diff_logits)
    soft_all = jax.nn.softmax(soft_all, axis=-1)
    soft_all = jnp.nan_to_num(soft_all)   # guard: batch rows with zero diff nodes
    # Note: the PyTorch straight-through multiplier (1 - x.detach() + x) has forward
    # value exactly 1.0 and is applied to a fancy-indexing *copy* of hidden, so the
    # forward value of `hidden` is unchanged — replicated here by doing nothing.
    _, argtopk = jax.lax.top_k(soft_all, TOPK)
    r_idx = jnp.broadcast_to(jnp.arange(batch_size)[:, None], argtopk.shape)
    hard_all = jnp.zeros((batch_size, n_ent), dtype=bool).at[r_idx, argtopk].set(True)
    bool_sampled = np.asarray(hard_all)[diff_nodes[:, 0], diff_nodes[:, 1]]
    bool_same[bool_diff] = bool_sampled
    return bool_same


def adaprop_forward(params, subs, rels, n_ent, KG, M_sub):
    n = len(subs)
    q_sub = np.asarray(subs, np.int64)
    q_rel = np.asarray(rels, np.int64)
    nodes = np.stack([np.arange(n, dtype=np.int64), q_sub], axis=1)
    hidden = jnp.zeros((n, HIDDEN_DIM), jnp.float32)
    h0 = jnp.zeros((n, HIDDEN_DIM), jnp.float32)
    proj = None

    for i in range(N_LAYER):
        nodes, edges, old_idx = get_neighbors(nodes, KG, M_sub, n_ent)
        n_node = nodes.shape[0]
        # index_copy of the previous h0 into the enlarged node set (host/XLA glue)
        h0_full = jnp.zeros((n_node, HIDDEN_DIM), jnp.float32).at[old_idx].set(h0)
        # last layer fuses W_final; earlier layers fuse Ws_layers[i]
        w_proj = params["W_final"] if i == N_LAYER - 1 else params["Ws_layers"][i]
        # dropout: identity (eval semantics)
        hidden, proj = adaprop_layer(params["layers"][i], params["gru"], w_proj,
                                     q_rel, hidden, edges, n_node, h0_full)
        h0 = hidden                                    # single-step GRU: h_n == output
        if i < N_LAYER - 1:
            bool_same = soft_to_hard(proj, nodes, n_ent, n, old_idx)
            keep = np.nonzero(bool_same)[0]
            nodes = nodes[keep]
            hidden = hidden[keep]
            h0 = hidden

    scores = proj                                      # last layer's fused W_final proj
    scores_all = jnp.zeros((n, n_ent), jnp.float32).at[
        nodes[:, 0], nodes[:, 1]].set(scores)
    return scores_all


if __name__ == "__main__":
    key = jax.random.PRNGKey(0)
    params = init_params(key)
    rng = np.random.default_rng(0)
    KG, M_sub = build_kg(rng)

    subs = [3, 17]
    rels = [1, 2]

    scores_all = adaprop_forward(params, subs, rels, N_ENT, KG, M_sub)
    scores_all = jax.block_until_ready(scores_all)

    assert scores_all.shape == (BATCH, N_ENT), scores_all.shape
    assert bool(jnp.all(jnp.isfinite(scores_all)))
    print("KERNEL_OK")
</pallas_src>

<mosaic_0001>
module attributes {stable_mosaic.version = 11 : i64} {
  func.func @_layer_kernel(%arg0: i32, %arg1: memref<1x12xi32, #tpu.memory_space<vmem>>, %arg2: memref<12x32xf32, #tpu.memory_space<vmem>>, %arg3: memref<12x32xf32, #tpu.memory_space<vmem>>, %arg4: memref<12x32xf32, #tpu.memory_space<vmem>>, %arg5: memref<96x16xf32, #tpu.memory_space<vmem>>, %arg6: memref<1x16xf32, #tpu.memory_space<vmem>>, %arg7: memref<1x16xf32, #tpu.memory_space<vmem>>, %arg8: memref<32x32xf32, #tpu.memory_space<vmem>>, %arg9: memref<11x32xf32, #tpu.memory_space<vmem>>, %arg10: memref<32x96xf32, #tpu.memory_space<vmem>>, %arg11: memref<32x96xf32, #tpu.memory_space<vmem>>, %arg12: memref<1x96xf32, #tpu.memory_space<vmem>>, %arg13: memref<1x96xf32, #tpu.memory_space<vmem>>, %arg14: memref<32x1xf32, #tpu.memory_space<vmem>>, %arg15: memref<11x32xf32, #tpu.memory_space<vmem>>, %arg16: memref<11x1xf32, #tpu.memory_space<vmem>>) attributes {dimension_semantics = [#tpu.dimension_semantics<arbitrary>], iteration_bounds = array<i64: 1>, scalar_prefetch = 0 : i64, scratch_operands = 0 : i64, tpu.core_type = #tpu.core_type<tc>, window_params = [{transform_indices = @transform_0, window_bounds = array<i64: 1, 12>}, {transform_indices = @transform_1, window_bounds = array<i64: 12, 32>}, {transform_indices = @transform_2, window_bounds = array<i64: 12, 32>}, {transform_indices = @transform_3, window_bounds = array<i64: 12, 32>}, {pipeline_mode = #tpu.pipeline_mode<synchronous>, transform_indices = @transform_4, window_bounds = array<i64: 96, 16>}, {pipeline_mode = #tpu.pipeline_mode<synchronous>, transform_indices = @transform_5, window_bounds = array<i64: 1, 16>}, {pipeline_mode = #tpu.pipeline_mode<synchronous>, transform_indices = @transform_6, window_bounds = array<i64: 1, 16>}, {pipeline_mode = #tpu.pipeline_mode<synchronous>, transform_indices = @transform_7, window_bounds = array<i64: 32, 32>}, {pipeline_mode = #tpu.pipeline_mode<synchronous>, transform_indices = @transform_8, window_bounds = array<i64: 11, 32>}, {pipeline_mode = #tpu.pipeline_mode<synchronous>, transform_indices = @transform_9, window_bounds = array<i64: 32, 96>}, {pipeline_mode = #tpu.pipeline_mode<synchronous>, transform_indices = @transform_10, window_bounds = array<i64: 32, 96>}, {pipeline_mode = #tpu.pipeline_mode<synchronous>, transform_indices = @transform_11, window_bounds = array<i64: 1, 96>}, {pipeline_mode = #tpu.pipeline_mode<synchronous>, transform_indices = @transform_12, window_bounds = array<i64: 1, 96>}, {pipeline_mode = #tpu.pipeline_mode<synchronous>, transform_indices = @transform_13, window_bounds = array<i64: 32, 1>}, {pipeline_mode = #tpu.pipeline_mode<synchronous>, transform_indices = @transform_14, window_bounds = array<i64: 11, 32>}, {pipeline_mode = #tpu.pipeline_mode<synchronous>, transform_indices = @transform_15, window_bounds = array<i64: 11, 1>}]} {
    %c0_i32 = arith.constant 0 : i32
    %0 = arith.cmpi eq, %arg0, %c0_i32 : i32
    %1 = arith.extui %0 : i1 to i32
    %c0_i32_0 = arith.constant 0 : i32
    %2 = arith.cmpi ne, %1, %c0_i32_0 : i32
    scf.if %2 {
      %cst_24 = arith.constant 0.000000e+00 : f32
      %40 = vector.broadcast %cst_24 : f32 to vector<11x32xf32>
      %c0_25 = arith.constant 0 : index
      %c0_26 = arith.constant 0 : index
      %41 = vector.load %arg15[%c0_25, %c0_26] : memref<11x32xf32, #tpu.memory_space<vmem>>, vector<11x32xf32>
      tpu.vector_store %arg15[%c0_25, %c0_26], %40 {strides = array<i32>} : memref<11x32xf32, #tpu.memory_space<vmem>>, vector<11x32xf32>,
    } else {
    }
    %c0 = arith.constant 0 : index
    %c0_1 = arith.constant 0 : index
    %3 = vector.load %arg2[%c0, %c0_1] : memref<12x32xf32, #tpu.memory_space<vmem>>, vector<12x32xf32>
    %c0_2 = arith.constant 0 : index
    %c0_3 = arith.constant 0 : index
    %4 = vector.load %arg3[%c0_2, %c0_3] : memref<12x32xf32, #tpu.memory_space<vmem>>, vector<12x32xf32>
    %c0_4 = arith.constant 0 : index
    %c0_5 = arith.constant 0 : index
    %5 = vector.load %arg4[%c0_4, %c0_5] : memref<12x32xf32, #tpu.memory_space<vmem>>, vector<12x32xf32>
    %6 = tpu.concatenate %3, %4, %5 in 1 : vector<12x32xf32>, vector<12x32xf32>, vector<12x32xf32> -> vector<12x96xf32>
    %c0_6 = arith.constant 0 : index
    %c0_7 = arith.constant 0 : index
    %7 = vector.load %arg5[%c0_6, %c0_7] : memref<96x16xf32, #tpu.memory_space<vmem>>, vector<96x16xf32>
    %cst = arith.constant dense<0.000000e+00> : vector<12x16xf32>
    %8 = tpu.matmul %6, %7, %cst {dimension_numbers = #tpu.dot_dimension_numbers<[1], [0], [0], [1], [0, 0, 1, 1], [], []>} : vector<12x96xf32>, vector<96x16xf32>, vector<12x16xf32> -> vector<12x16xf32>
    %c0_8 = arith.constant 0 : index
    %c0_9 = arith.constant 0 : index
    %9 = vector.load %arg6[%c0_8, %c0_9] : memref<1x16xf32, #tpu.memory_space<vmem>>, vector<1x16xf32>
    %10 = vector.broadcast %9 : vector<1x16xf32> to vector<12x16xf32>
    %11 = arith.addf %8, %10 : vector<12x16xf32>
    %cst_10 = arith.constant 0.000000e+00 : f32
    %12 = vector.broadcast %cst_10 : f32 to vector<12x16xf32>
    %13 = arith.maximumf %11, %12 : vector<12x16xf32>
    %c0_11 = arith.constant 0 : index
    %c0_12 = arith.constant 0 : index
    %14 = vector.load %arg7[%c0_11, %c0_12] : memref<1x16xf32, #tpu.memory_space<vmem>>, vector<1x16xf32>
    %15 = vector.broadcast %14 : vector<1x16xf32> to vector<12x16xf32>
    %16 = arith.mulf %13, %15 : vector<12x16xf32>
    %cst_13 = arith.constant dense<0.000000e+00> : vector<12xf32>
    %17 = vector.multi_reduction <add>, %16, %cst_13 [1] : vector<12x16xf32> to vector<12xf32>
    %18 = vector.shape_cast %17 : vector<12xf32> to vector<12x1xf32>
    %19 = arith.negf %18 : vector<12x1xf32>
    %20 = math.exp %19 : vector<12x1xf32>
    %cst_14 = arith.constant 1.000000e+00 : f32
    %21 = vector.broadcast %cst_14 : f32 to vector<12x1xf32>
    %22 = arith.addf %21, %20 : vector<12x1xf32>
    %23 = arith.divf %21, %22 : vector<12x1xf32>
    %24 = arith.addf %3, %4 : vector<12x32xf32>
    %25 = vector.broadcast %23 : vector<12x1xf32> to vector<12x32xf32>
    %26 = arith.mulf %24, %25 : vector<12x32xf32>
    %27 = tpu.iota {dimensions = array<i32: 0>} : vector<11x12xi32>
    %c0_15 = arith.constant 0 : index
    %c0_16 = arith.constant 0 : index
    %28 = vector.load %arg1[%c0_15, %c0_16] : memref<1x12xi32, #tpu.memory_space<vmem>>, vector<1x12xi32>
    %29 = vector.broadcast %28 : vector<1x12xi32> to vector<11x12xi32>
    %30 = arith.cmpi eq, %27, %29 : vector<11x12xi32>
    %31 = arith.extui %30 : vector<11x12xi1> to vector<11x12xi32>
    %32 = arith.sitofp %31 : vector<11x12xi32> to vector<11x12xf32>
    %c0_17 = arith.constant 0 : index
    %c0_18 = arith.constant 0 : index
    %33 = vector.load %arg15[%c0_17, %c0_18] : memref<11x32xf32, #tpu.memory_space<vmem>>, vector<11x32xf32>
    %cst_19 = arith.constant dense<0.000000e+00> : vector<11x32xf32>
    %34 = tpu.matmul %32, %26, %cst_19 {dimension_numbers = #tpu.dot_dimension_numbers<[1], [0], [0], [1], [0, 0, 1, 1], [], []>} : vector<11x12xf32>, vector<12x32xf32>, vector<11x32xf32> -> vector<11x32xf32>
    %35 = arith.addf %33, %34 : vector<11x32xf32>
    %c0_20 = arith.constant 0 : index
    %c0_21 = arith.constant 0 : index
    %36 = vector.load %arg15[%c0_20, %c0_21] : memref<11x32xf32, #tpu.memory_space<vmem>>, vector<11x32xf32>
    tpu.vector_store %arg15[%c0_20, %c0_21], %35 {strides = array<i32>} : memref<11x32xf32, #tpu.memory_space<vmem>>, vector<11x32xf32>,
    %c0_i32_22 = arith.constant 0 : i32
    %37 = arith.cmpi eq, %arg0, %c0_i32_22 : i32
    %38 = arith.extui %37 : i1 to i32
    %c0_i32_23 = arith.constant 0 : i32
    %39 = arith.cmpi ne, %38, %c0_i32_23 : i32
    scf.if %39 {
      %c0_24 = arith.constant 0 : index
      %c0_25 = arith.constant 0 : index
      %40 = vector.load %arg15[%c0_24, %c0_25] : memref<11x32xf32, #tpu.memory_space<vmem>>, vector<11x32xf32>
      %c0_26 = arith.constant 0 : index
      %c0_27 = arith.constant 0 : index
      %41 = vector.load %arg8[%c0_26, %c0_27] : memref<32x32xf32, #tpu.memory_space<vmem>>, vector<32x32xf32>
      %cst_28 = arith.constant dense<0.000000e+00> : vector<11x32xf32>
      %42 = tpu.matmul %40, %41, %cst_28 {dimension_numbers = #tpu.dot_dimension_numbers<[1], [0], [0], [1], [0, 0, 1, 1], [], []>} : vector<11x32xf32>, vector<32x32xf32>, vector<11x32xf32> -> vector<11x32xf32>
      %cst_29 = arith.constant 0.000000e+00 : f32
      %43 = vector.broadcast %cst_29 : f32 to vector<11x32xf32>
      %44 = arith.maximumf %42, %43 : vector<11x32xf32>
      %c0_30 = arith.constant 0 : index
      %c0_31 = arith.constant 0 : index
      %45 = vector.load %arg9[%c0_30, %c0_31] : memref<11x32xf32, #tpu.memory_space<vmem>>, vector<11x32xf32>
      %c0_32 = arith.constant 0 : index
      %c0_33 = arith.constant 0 : index
      %46 = vector.load %arg10[%c0_32, %c0_33] : memref<32x96xf32, #tpu.memory_space<vmem>>, vector<32x96xf32>
      %cst_34 = arith.constant dense<0.000000e+00> : vector<11x96xf32>
      %47 = tpu.matmul %44, %46, %cst_34 {dimension_numbers = #tpu.dot_dimension_numbers<[1], [0], [0], [1], [0, 0, 1, 1], [], []>} : vector<11x32xf32>, vector<32x96xf32>, vector<11x96xf32> -> vector<11x96xf32>
      %c0_35 = arith.constant 0 : index
      %c0_36 = arith.constant 0 : index
      %48 = vector.load %arg12[%c0_35, %c0_36] : memref<1x96xf32, #tpu.memory_space<vmem>>, vector<1x96xf32>
      %49 = vector.broadcast %48 : vector<1x96xf32> to vector<11x96xf32>
      %50 = arith.addf %47, %49 : vector<11x96xf32>
      %c0_37 = arith.constant 0 : index
      %c0_38 = arith.constant 0 : index
      %51 = vector.load %arg11[%c0_37, %c0_38] : memref<32x96xf32, #tpu.memory_space<vmem>>, vector<32x96xf32>
      %cst_39 = arith.constant dense<0.000000e+00> : vector<11x96xf32>
      %52 = tpu.matmul %45, %51, %cst_39 {dimension_numbers = #tpu.dot_dimension_numbers<[1], [0], [0], [1], [0, 0, 1, 1], [], []>} : vector<11x32xf32>, vector<32x96xf32>, vector<11x96xf32> -> vector<11x96xf32>
      %c0_40 = arith.constant 0 : index
      %c0_41 = arith.constant 0 : index
      %53 = vector.load %arg13[%c0_40, %c0_41] : memref<1x96xf32, #tpu.memory_space<vmem>>, vector<1x96xf32>
      %54 = vector.broadcast %53 : vector<1x96xf32> to vector<11x96xf32>
      %55 = arith.addf %52, %54 : vector<11x96xf32>
      %56 = vector.extract_strided_slice %50 {offsets = [0, 0], sizes = [11, 32], strides = [1, 1]} : vector<11x96xf32> to vector<11x32xf32>
      %57 = vector.extract_strided_slice %55 {offsets = [0, 0], sizes = [11, 32], strides = [1, 1]} : vector<11x96xf32> to vector<11x32xf32>
      %58 = arith.addf %56, %57 : vector<11x32xf32>
      %59 = arith.negf %58 : vector<11x32xf32>
      %60 = math.exp %59 : vector<11x32xf32>
      %cst_42 = arith.constant 1.000000e+00 : f32
      %61 = vector.broadcast %cst_42 : f32 to vector<11x32xf32>
      %62 = arith.addf %61, %60 : vector<11x32xf32>
      %63 = arith.divf %61, %62 : vector<11x32xf32>
      %64 = vector.extract_strided_slice %50 {offsets = [0, 32], sizes = [11, 32], strides = [1, 1]} : vector<11x96xf32> to vector<11x32xf32>
      %65 = vector.extract_strided_slice %55 {offsets = [0, 32], sizes = [11, 32], strides = [1, 1]} : vector<11x96xf32> to vector<11x32xf32>
      %66 = arith.addf %64, %65 : vector<11x32xf32>
      %67 = arith.negf %66 : vector<11x32xf32>
      %68 = math.exp %67 : vector<11x32xf32>
      %cst_43 = arith.constant 1.000000e+00 : f32
      %69 = vector.broadcast %cst_43 : f32 to vector<11x32xf32>
      %70 = arith.addf %69, %68 : vector<11x32xf32>
      %71 = arith.divf %69, %70 : vector<11x32xf32>
      %72 = vector.extract_strided_slice %50 {offsets = [0, 64], sizes = [11, 32], strides = [1, 1]} : vector<11x96xf32> to vector<11x32xf32>
      %73 = vector.extract_strided_slice %55 {offsets = [0, 64], sizes = [11, 32], strides = [1, 1]} : vector<11x96xf32> to vector<11x32xf32>
      %74 = arith.mulf %63, %73 : vector<11x32xf32>
      %75 = arith.addf %72, %74 : vector<11x32xf32>
      %76 = math.tanh %75 : vector<11x32xf32>
      %cst_44 = arith.constant 1.000000e+00 : f32
      %77 = vector.broadcast %cst_44 : f32 to vector<11x32xf32>
      %78 = arith.subf %77, %71 : vector<11x32xf32>
      %79 = arith.mulf %78, %76 : vector<11x32xf32>
      %80 = arith.mulf %71, %45 : vector<11x32xf32>
      %81 = arith.addf %79, %80 : vector<11x32xf32>
      %c0_45 = arith.constant 0 : index
      %c0_46 = arith.constant 0 : index
      %82 = vector.load %arg15[%c0_45, %c0_46] : memref<11x32xf32, #tpu.memory_space<vmem>>, vector<11x32xf32>
      tpu.vector_store %arg15[%c0_45, %c0_46], %81 {strides = array<i32>} : memref<11x32xf32, #tpu.memory_space<vmem>>, vector<11x32xf32>,
      %c0_47 = arith.constant 0 : index
      %c0_48 = arith.constant 0 : index
      %83 = vector.load %arg14[%c0_47, %c0_48] : memref<32x1xf32, #tpu.memory_space<vmem>>, vector<32x1xf32>
      %cst_49 = arith.constant dense<0.000000e+00> : vector<11x1xf32>
      %84 = tpu.matmul %81, %83, %cst_49 {dimension_numbers = #tpu.dot_dimension_numbers<[1], [0], [0], [1], [0, 0, 1, 1], [], []>} : vector<11x32xf32>, vector<32x1xf32>, vector<11x1xf32> -> vector<11x1xf32>
      %c0_50 = arith.constant 0 : index
      %c0_51 = arith.constant 0 : index
      %85 = vector.load %arg16[%c0_50, %c0_51] : memref<11x1xf32, #tpu.memory_space<vmem>>, vector<11x1xf32>
      tpu.vector_store %arg16[%c0_50, %c0_51], %84 {strides = array<i32>} : memref<11x1xf32, #tpu.memory_space<vmem>>, vector<11x1xf32>,
    } else {
    }
    return
  }
  func.func @transform_0(%arg0: i32) -> (i32, i32) {
    %c0_i32 = arith.constant 0 : i32
    %c0_i32_0 = arith.constant 0 : i32
    return %c0_i32, %arg0 : i32, i32
  }
  func.func @transform_1(%arg0: i32) -> (i32, i32) {
    %c0_i32 = arith.constant 0 : i32
    %c0_i32_0 = arith.constant 0 : i32
    return %arg0, %c0_i32 : i32, i32
  }
  func.func @transform_2(%arg0: i32) -> (i32, i32) {
    %c0_i32 = arith.constant 0 : i32
    %c0_i32_0 = arith.constant 0 : i32
    return %arg0, %c0_i32 : i32, i32
  }
  func.func @transform_3(%arg0: i32) -> (i32, i32) {
    %c0_i32 = arith.constant 0 : i32
    %c0_i32_0 = arith.constant 0 : i32
    return %arg0, %c0_i32 : i32, i32
  }
  func.func @transform_4(%arg0: i32) -> (i32, i32) {
    %c0_i32 = arith.constant 0 : i32
    %c0_i32_0 = arith.constant 0 : i32
    %c0_i32_1 = arith.constant 0 : i32
    return %c0_i32, %c0_i32_0 : i32, i32
  }
  func.func @transform_5(%arg0: i32) -> (i32, i32) {
    %c0_i32 = arith.constant 0 : i32
    %c0_i32_0 = arith.constant 0 : i32
    %c0_i32_1 = arith.constant 0 : i32
    return %c0_i32, %c0_i32_0 : i32, i32
  }
  func.func @transform_6(%arg0: i32) -> (i32, i32) {
    %c0_i32 = arith.constant 0 : i32
    %c0_i32_0 = arith.constant 0 : i32
    %c0_i32_1 = arith.constant 0 : i32
    return %c0_i32, %c0_i32_0 : i32, i32
  }
  func.func @transform_7(%arg0: i32) -> (i32, i32) {
    %c0_i32 = arith.constant 0 : i32
    %c0_i32_0 = arith.constant 0 : i32
    %c0_i32_1 = arith.constant 0 : i32
    return %c0_i32, %c0_i32_0 : i32, i32
  }
  func.func @transform_8(%arg0: i32) -> (i32, i32) {
    %c0_i32 = arith.constant 0 : i32
    %c0_i32_0 = arith.constant 0 : i32
    %c0_i32_1 = arith.constant 0 : i32
    return %c0_i32, %c0_i32_0 : i32, i32
  }
  func.func @transform_9(%arg0: i32) -> (i32, i32) {
    %c0_i32 = arith.constant 0 : i32
    %c0_i32_0 = arith.constant 0 : i32
    %c0_i32_1 = arith.constant 0 : i32
    return %c0_i32, %c0_i32_0 : i32, i32
  }
  func.func @transform_10(%arg0: i32) -> (i32, i32) {
    %c0_i32 = arith.constant 0 : i32
    %c0_i32_0 = arith.constant 0 : i32
    %c0_i32_1 = arith.constant 0 : i32
    return %c0_i32, %c0_i32_0 : i32, i32
  }
  func.func @transform_11(%arg0: i32) -> (i32, i32) {
    %c0_i32 = arith.constant 0 : i32
    %c0_i32_0 = arith.constant 0 : i32
    %c0_i32_1 = arith.constant 0 : i32
    return %c0_i32, %c0_i32_0 : i32, i32
  }
  func.func @transform_12(%arg0: i32) -> (i32, i32) {
    %c0_i32 = arith.constant 0 : i32
    %c0_i32_0 = arith.constant 0 : i32
    %c0_i32_1 = arith.constant 0 : i32
    return %c0_i32, %c0_i32_0 : i32, i32
  }
  func.func @transform_13(%arg0: i32) -> (i32, i32) {
    %c0_i32 = arith.constant 0 : i32
    %c0_i32_0 = arith.constant 0 : i32
    %c0_i32_1 = arith.constant 0 : i32
    return %c0_i32, %c0_i32_0 : i32, i32
  }
  func.func @transform_14(%arg0: i32) -> (i32, i32) {
    %c0_i32 = arith.constant 0 : i32
    %c0_i32_0 = arith.constant 0 : i32
    %c0_i32_1 = arith.constant 0 : i32
    return %c0_i32, %c0_i32_0 : i32, i32
  }
  func.func @transform_15(%arg0: i32) -> (i32, i32) {
    %c0_i32 = arith.constant 0 : i32
    %c0_i32_0 = arith.constant 0 : i32
    %c0_i32_1 = arith.constant 0 : i32
    return %c0_i32, %c0_i32_0 : i32, i32
  }
}

</mosaic_0001>

<llo_original>
// kernel: tpu_custom_call.1
$region0: #{tpu_custom_call.1}
  #allocation0 [shape = 'u32[]', space=smem, size = 0x4, offset = 0x4, fixed_abs, tag = 'smem constant byte address 0x4 - core index']
  #allocation1 [shape = 'u32[72,128]{1,0:T(1,128)}', space=vmem, size = 0x9000, scoped, tag = 'internal scratch']
  %s0 = inlined_call_operand.vmem [shape: s32[1,12], index: 0, kind: input, shape index: {}]
  %s1 = inlined_call_operand.vmem [shape: f32[12,32], index: 1, kind: input, shape index: {}]
  %s2 = inlined_call_operand.vmem [shape: f32[12,32], index: 2, kind: input, shape index: {}]
  %s3 = inlined_call_operand.hbm [shape: f32[12,32], index: 3, kind: input, shape index: {}]
  %s4 = inlined_call_operand.vmem [shape: f32[96,16], index: 4, kind: input, shape index: {}]
  %s5 = inlined_call_operand.vmem [shape: f32[1,16], index: 5, kind: input, shape index: {}]
  %s6 = inlined_call_operand.vmem [shape: f32[1,16], index: 6, kind: input, shape index: {}]
  %s7 = inlined_call_operand.vmem [shape: f32[32,32], index: 7, kind: input, shape index: {}]
  %s8 = inlined_call_operand.hbm [shape: f32[11,32], index: 8, kind: input, shape index: {}]
  %s9 = inlined_call_operand.vmem [shape: f32[32,96], index: 9, kind: input, shape index: {}]
  %s10 = inlined_call_operand.vmem [shape: f32[32,96], index: 10, kind: input, shape index: {}]
  %s11 = inlined_call_operand.vmem [shape: f32[1,96], index: 11, kind: input, shape index: {}]
  %s12 = inlined_call_operand.vmem [shape: f32[1,96], index: 12, kind: input, shape index: {}]
  %s13 = inlined_call_operand.vmem [shape: f32[32,1], index: 13, kind: input, shape index: {}]
  %s14 = inlined_call_operand.hbm [shape: f32[11,32], index: 14, kind: output, shape index: {0}]
  %s15 = inlined_call_operand.vmem [shape: f32[11,1], index: 15, kind: output, shape index: {1}]
  %16 = xla_tuple %s14, %s15
  %s17 = sld [smem:[#allocation0]]
  $region90: #{tpu_custom_call.1} parent=0
    _
  %s19 = ssub.s32 1, %s17
  %s20 = scalar_select 0, %s19, %s17
  $region1: #{tpu_custom_call.1} parent=0
    #allocation2 [shape = 'u8[8192]{0}', space=vmem, size = 0x2000, scoped, tag = 'input window, operand 3, single buffered']
    #allocation3 [shape = 's32[1]{0}', space=sflag, size = 0x4, scoped, tag = 'scoped memory for tpu_custom_call.1']
    #allocation4 [shape = 's32[1]{0}', space=sflag, size = 0x4, scoped, tag = 'scoped memory for tpu_custom_call.1']
    #allocation5 [shape = 'u8[8192]{0}', space=vmem, size = 0x2000, scoped, tag = 'input window, operand 8, single buffered']
    #allocation6 [shape = 's32[1]{0}', space=sflag, size = 0x4, scoped, tag = 'scoped memory for tpu_custom_call.1']
    #allocation7 [shape = 'u8[8192]{0}', space=vmem, size = 0x2000, scoped, tag = 'output window, operand 0, single buffered']
    %21 = vsyncpa [#allocation3], 0
    %22 = vsyncpa [#allocation6], 0
    %23 = vsyncpa [#allocation4], 0
    // Predicated region
    $region2: #{tpu_custom_call.1} parent=1 // pred_check
      _
    $region3: #{tpu_custom_call.1} parent=1 // pred_check_branch
      %25 = sbr.rel (0) target = $region5
    $region4: #{tpu_custom_call.1} parent=1 // pred_region
      _
    $region5: #{tpu_custom_call.1} parent=1 // pred_fallthru
      _
    // Predicated region
    $region6: #{tpu_custom_call.1} parent=1 // pred_check
      _
    $region7: #{tpu_custom_call.1} parent=1 // pred_check_branch
      %27 = sbr.rel (0) target = $region9
    $region8: #{tpu_custom_call.1} parent=1 // pred_region
      _
    $region9: #{tpu_custom_call.1} parent=1 // pred_fallthru
      _
    // Predicated region
    $region10: #{tpu_custom_call.1} parent=1 // pred_check
      _
    $region11: #{tpu_custom_call.1} parent=1 // pred_check_branch
      %29 = sbr.rel (0) target = $region13
    $region12: #{tpu_custom_call.1} parent=1 // pred_region
      _
    $region13: #{tpu_custom_call.1} parent=1 // pred_fallthru
      _
    // Predicated region
    $region14: #{tpu_custom_call.1} parent=1 // pred_check
      _
    $region15: #{tpu_custom_call.1} parent=1 // pred_check_branch
      %31 = sbr.rel (0) target = $region17
    $region16: #{tpu_custom_call.1} parent=1 // pred_region
      %33 = vsyncadd [#allocation3], 0
      %s34 = sshll.u32 %s3, 4
      %s35 = int_to_ptr.hbm [resolvable:$true] %s34
      %s36 = sshll.u32 [#allocation2], 4
      %s37 = int_to_ptr.vmem [resolvable:$true] %s36
      %42 = dma.hbm_to_vmem [thread:$0]  %s35, 256, %s37, [#allocation3], 128, 128, 8
    $region17: #{tpu_custom_call.1} parent=1 // pred_fallthru
      _
    // Predicated region
    $region18: #{tpu_custom_call.1} parent=1 // pred_check
      _
    $region19: #{tpu_custom_call.1} parent=1 // pred_check_branch
      %44 = sbr.rel (0) target = $region21
    $region20: #{tpu_custom_call.1} parent=1 // pred_region
      _
    $region21: #{tpu_custom_call.1} parent=1 // pred_fallthru
      _
    // Predicated region
    $region22: #{tpu_custom_call.1} parent=1 // pred_check
      _
    $region23: #{tpu_custom_call.1} parent=1 // pred_check_branch
      %46 = sbr.rel (0) target = $region25
    $region24: #{tpu_custom_call.1} parent=1 // pred_region
      _
    $region25: #{tpu_custom_call.1} parent=1 // pred_fallthru
      _
    // Predicated region
    $region26: #{tpu_custom_call.1} parent=1 // pred_check
      _
    $region27: #{tpu_custom_call.1} parent=1 // pred_check_branch
      %48 = sbr.rel (0) target = $region29
    $region28: #{tpu_custom_call.1} parent=1 // pred_region
      _
    $region29: #{tpu_custom_call.1} parent=1 // pred_fallthru
      _
    // Predicated region
    $region30: #{tpu_custom_call.1} parent=1 // pred_check
      _
    $region31: #{tpu_custom_call.1} parent=1 // pred_check_branch
      %50 = sbr.rel (0) target = $region33
    $region32: #{tpu_custom_call.1} parent=1 // pred_region
      _
    $region33: #{tpu_custom_call.1} parent=1 // pred_fallthru
      _
    // Predicated region
    $region34: #{tpu_custom_call.1} parent=1 // pred_check
      _
    $region35: #{tpu_custom_call.1} parent=1 // pred_check_branch
      %52 = sbr.rel (0) target = $region37
    $region36: #{tpu_custom_call.1} parent=1 // pred_region
      %54 = vsyncadd [#allocation6], 0
      %s55 = sshll.u32 %s8, 4
      %s56 = int_to_ptr.hbm [resolvable:$true] %s55
      %s57 = sshll.u32 [#allocation5], 4
      %s58 = int_to_ptr.vmem [resolvable:$true] %s57
      %63 = dma.hbm_to_vmem [thread:$0]  %s56, 256, %s58, [#allocation6], 128, 128, 8
    $region37: #{tpu_custom_call.1} parent=1 // pred_fallthru
      _
    // Predicated region
    $region38: #{tpu_custom_call.1} parent=1 // pred_check
      _
    $region39: #{tpu_custom_call.1} parent=1 // pred_check_branch
      %65 = sbr.rel (0) target = $region41
    $region40: #{tpu_custom_call.1} parent=1 // pred_region
      _
    $region41: #{tpu_custom_call.1} parent=1 // pred_fallthru
      _
    // Predicated region
    $region42: #{tpu_custom_call.1} parent=1 // pred_check
      _
    $region43: #{tpu_custom_call.1} parent=1 // pred_check_branch
      %67 = sbr.rel (0) target = $region45
    $region44: #{tpu_custom_call.1} parent=1 // pred_region
      _
    $region45: #{tpu_custom_call.1} parent=1 // pred_fallthru
      _
    // Predicated region
    $region46: #{tpu_custom_call.1} parent=1 // pred_check
      _
    $region47: #{tpu_custom_call.1} parent=1 // pred_check_branch
      %69 = sbr.rel (0) target = $region49
    $region48: #{tpu_custom_call.1} parent=1 // pred_region
      _
    $region49: #{tpu_custom_call.1} parent=1 // pred_fallthru
      _
    // Predicated region
    $region50: #{tpu_custom_call.1} parent=1 // pred_check
      _
    $region51: #{tpu_custom_call.1} parent=1 // pred_check_branch
      %71 = sbr.rel (0) target = $region53
    $region52: #{tpu_custom_call.1} parent=1 // pred_region
      _
    $region53: #{tpu_custom_call.1} parent=1 // pred_fallthru
      _
    // Predicated region
    $region54: #{tpu_custom_call.1} parent=1 // pred_check
      _
    $region55: #{tpu_custom_call.1} parent=1 // pred_check_branch
      %73 = sbr.rel (0) target = $region57
    $region56: #{tpu_custom_call.1} parent=1 // pred_region
      _
    $region57: #{tpu_custom_call.1} parent=1 // pred_fallthru
      _
    // Predicated region
    $region58: #{tpu_custom_call.1} parent=1 // pred_check
      _
    $region59: #{tpu_custom_call.1} parent=1 // pred_check_branch
      %75 = sbr.rel (0) target = $region61
    $region60: #{tpu_custom_call.1} parent=1 // pred_region
      %77 = dma.done [#allocation3], 256
    $region61: #{tpu_custom_call.1} parent=1 // pred_fallthru
      _
    // Predicated region
    $region62: #{tpu_custom_call.1} parent=1 // pred_check
      _
    $region63: #{tpu_custom_call.1} parent=1 // pred_check_branch
      %79 = sbr.rel (0) target = $region65
    $region64: #{tpu_custom_call.1} parent=1 // pred_region
      %81 = dma.done [#allocation6], 256
    $region65: #{tpu_custom_call.1} parent=1 // pred_fallthru
      _
    %p82 = scmp.eq.s32.totalorder 0, 0
    // Predicated region
    $region66: #{tpu_custom_call.1} parent=1 // pred_check
      %p83 = pneg %p82
    $region67: #{tpu_custom_call.1} parent=1 // pred_check_branch
      %85 = sbr.rel (%p83) target = $region69
    $region68: #{tpu_custom_call.1} parent=1 // pred_region
      %vm86 = vcmask 261120
      %87 = vst.msk [vmem:[#allocation7] sm:$0xff] %vm86, 0.0
      %vm88 = vcmask 256000
      %89 = vst.msk [vmem:[#allocation7 + $0x8] sm:$0x7] %vm88, 0.0
    $region69: #{tpu_custom_call.1} parent=1 // pred_fallthru
      _
    %v90 = vld [vmem:[%s1] sm:$0xff]
    %v91 = vld [vmem:[%s1 + $0x8] sm:$0xf]
    %v92 = vld [vmem:[%s2] sm:$0xff]
    %v93 = vld [vmem:[%s2 + $0x8] sm:$0xf]
    %v94 = vld [vmem:[#allocation2] sm:$0xff]
    %v95 = vld [vmem:[#allocation2 + $0x8] sm:$0xf]
    %98 = vrot.lane.b32.xlu0 %v92, 32
    %v99 = vpop.permute.xlu0 %98
    %100 = vrot.lane.b32.xlu0 %v93, 32
    %v101 = vpop.permute.xlu0 %100
    %106 = vrot.lane.b32.xlu0 %v94, 64
    %v107 = vpop.permute.xlu0 %106
    %108 = vrot.lane.b32.xlu0 %v95, 64
    %v109 = vpop.permute.xlu0 %108
    %vm112 = vcmask 261120
    %v113 = vsel %vm112, %v90, %v99
    %v114 = vsel %vm112, %v91, %v101
    %vm115 = vcmask 523264
    %v116 = vsel %vm115, %v113, %v107
    %v117 = vsel %vm115, %v114, %v109
    %v118 = vld [vmem:[%s4] sm:$0xff]
    %v119 = vld [vmem:[%s4 + $0x8] sm:$0xff]
    %v120 = vld [vmem:[%s4 + $0x10] sm:$0xff]
    %v121 = vld [vmem:[%s4 + $0x18] sm:$0xff]
    %v122 = vld [vmem:[%s4 + $0x20] sm:$0xff]
    %v123 = vld [vmem:[%s4 + $0x28] sm:$0xff]
    %v124 = vld [vmem:[%s4 + $0x30] sm:$0xff]
    %v125 = vld [vmem:[%s4 + $0x38] sm:$0xff]
    %v126 = vld [vmem:[%s4 + $0x40] sm:$0xff]
    %v127 = vld [vmem:[%s4 + $0x48] sm:$0xff]
    %v128 = vld [vmem:[%s4 + $0x50] sm:$0xff]
    %v129 = vld [vmem:[%s4 + $0x58] sm:$0xff]
    %v130 = vld [vmem:[%s5] sm:$0x1]
    %v132 = vperm.slane %v130, 0
    %vm134 = vcmask 785408
    %v136 = vsel %vm134, %v116, 0
    %v139 = vsel %vm134, %v117, 0
    %141 = vmatpush.msra.mxu0 0.0
    %142 = vmatpush.msra.mxu0 0.0
    %143 = vmatpush.msra.mxu0 0.0
    %144 = vmatpush.msra.mxu0 0.0
    %145 = vmatpush.msra.mxu0 %v129
    %146 = vmatpush.msra.mxu0 %v128
    %147 = vmatpush.msra.mxu0 %v127
    %148 = vmatpush.msra.mxu0 %v126
    %149 = vmatpush.msra.mxu0 %v125
    %150 = vmatpush.msra.mxu0 %v124
    %151 = vmatpush.msra.mxu0 %v123
    %152 = vmatpush.msra.mxu0 %v122
    %153 = vmatpush.msra.mxu0 %v121
    %154 = vmatpush.msra.mxu0 %v120
    %155 = vmatpush.msra.mxu0 %v119
    %156 = vmatpush.msra.mxu0 %v118
    %157 = vmatmul.f32.gmra.mxu0 %v136
    %v158 = vpop.f32.mrf.mxu0
    %v159 = vadd.f32 %v132, %v158
    %160 = vmatmul.f32.gmra.mxu0 %v139
    %v161 = vpop.f32.mrf.mxu0
    %v162 = vadd.f32 %v132, %v161
    %163 = vdwg.mxu0
    %v164 = vmax.f32 %v159, 0.0
    %v165 = vmax.f32 %v162, 0.0
    %v166 = vld [vmem:[%s6] sm:$0x1]
    %v168 = vperm.slane %v166, 0
    %v170 = vmul.f32 %v164, %v168
    %v171 = vmul.f32 %v165, %v168
    %vm172 = vcmask 130048
    %v173 = vsel %vm172, %v170, 0.0
    %174 = vadd.xlane.f32.xlu0 %v173
    %v175 = vpop.xlane.xlu0 %174
    %vm176 = vcmask 125952
    %v177 = vsel %vm176, %v171, 0.0
    %178 = vadd.xlane.f32.xlu0 %v177
    %v179 = vpop.xlane.xlu0 %178
    %v180 = vxor.u32 %v175, 2147483648
    %v181 = vxor.u32 %v179, 2147483648
    %v182 = vmul.f32 %v180, 1.442695
    %v183 = vpow.pop %v182
    %v184 = vmul.f32 %v181, 1.442695
    %v185 = vpow.pop %v184
    %v186 = vadd.f32 %v183, 1.0
    %v187 = vadd.f32 %v185, 1.0
    %v188 = vrcp.pop %v186
    %v189 = vmul.f32 %v186, %v188
    %v190 = vsub.f32 1.0, %v189
    %v191 = vmul.f32 %v188, %v190
    %v192 = vadd.f32 %v188, %v191
    %vm193 = vweird.f32 %v186
    %vm194 = vweird.f32 %v188
    %vm195 = vmor %vm193, %vm194
    %v196 = vsel %vm195, %v188, %v192
    %v197 = vand.u32 2147483647, %v186
    %vm198 = vcmp.eq.f32.partialorder %v197, 8.507059e+37
    %v199 = vand.u32 %v186, 2147483648
    %v200 = vor.u32 1.1754944e-38, %v199
    %v201 = vsel %vm198, %v200, %v196
    %v202 = vmul.f32 1.0, %v201
    %v203 = vrcp.pop %v187
    %v204 = vmul.f32 %v187, %v203
    %v205 = vsub.f32 1.0, %v204
    %v206 = vmul.f32 %v203, %v205
    %v207 = vadd.f32 %v203, %v206
    %vm208 = vweird.f32 %v187
    %vm209 = vweird.f32 %v203
    %vm210 = vmor %vm208, %vm209
    %v211 = vsel %vm210, %v203, %v207
    %v212 = vand.u32 2147483647, %v187
    %vm213 = vcmp.eq.f32.partialorder %v212, 8.507059e+37
    %v214 = vand.u32 %v187, 2147483648
    %v215 = vor.u32 1.1754944e-38, %v214
    %v216 = vsel %vm213, %v215, %v211
    %v217 = vmul.f32 1.0, %v216
    %v218 = vadd.f32 %v90, %v92
    %v219 = vadd.f32 %v91, %v93
    %v220 = vmul.f32 %v218, %v202
    %v221 = vmul.f32 %v219, %v217
    %v222 = vlaneseq
    %v223 = vshrl.u32 %v222, 7
    %v224 = vadd.s32 %v223, 8
    %v225 = vld [vmem:[%s0] sm:$0x1]
    %v226 = vperm.slane %v225, 0
    %vm227 = vcmp.eq.s32.totalorder %v223, %v226
    %vm228 = vcmp.eq.s32.totalorder %v224, %v226
    %v229 = vsel %vm227, 1, 0
    %v230 = vsel %vm228, 1, 0
    %v231 = vcvt.s32.f32 %v229
    %v232 = vcvt.s32.f32 %v230
    %v233 = vld [vmem:[#allocation7] sm:$0xff]
    %v234 = vld [vmem:[#allocation7 + $0x8] sm:$0x7]
    %vm235 = vcmask 97280
    %v237 = vsel %vm235, %v231, 0
    %v240 = vsel %vm235, %v232, 0
    %vm242 = vcmask 1043456
    %v244 = vsel %vm242, %v221, 0
    %246 = vmatpush.msra.mxu0 0.0
    %247 = vmatpush.msra.mxu0 0.0
    %248 = vmatpush.msra.mxu0 0.0
    %249 = vmatpush.msra.mxu0 0.0
    %250 = vmatpush.msra.mxu0 0.0
    %251 = vmatpush.msra.mxu0 0.0
    %252 = vmatpush.msra.mxu0 0.0
    %253 = vmatpush.msra.mxu0 0.0
    %254 = vmatpush.msra.mxu0 0.0
    %255 = vmatpush.msra.mxu0 0.0
    %256 = vmatpush.msra.mxu0 0.0
    %257 = vmatpush.msra.mxu0 0.0
    %258 = vmatpush.msra.mxu0 0.0
    %259 = vmatpush.msra.mxu0 0.0
    %260 = vmatpush.msra.mxu0 %v244
    %261 = vmatpush.msra.mxu0 %v220
    %262 = vmatmul.f32.gmra.mxu0 %v237
    %v263 = vpop.f32.mrf.mxu0
    %v264 = vadd.f32 0.0, %v263
    %265 = vmatmul.f32.gmra.mxu0 %v240
    %v266 = vpop.f32.mrf.mxu0
    %v267 = vadd.f32 0.0, %v266
    %268 = vdwg.mxu0
    %v269 = vadd.f32 %v233, %v264
    %v270 = vadd.f32 %v234, %v267
    %271 = vst.msk [vmem:[#allocation7] sm:$0xff] %vm112, %v269
    %vm272 = vcmask 256000
    %273 = vst.msk [vmem:[#allocation7 + $0x8] sm:$0x7] %vm272, %v270
    // Predicated region
    $region70: #{tpu_custom_call.1} parent=1 // pred_check
      %p274 = pneg %p82
    $region71: #{tpu_custom_call.1} parent=1 // pred_check_branch
      %276 = sbr.rel (%p274) target = $region73
    $region72: #{tpu_custom_call.1} parent=1 // pred_region
      %v277 = vld [vmem:[#allocation7] sm:$0xff]
      %v278 = vld [vmem:[#allocation7 + $0x8] sm:$0x7]
      %v279 = vld [vmem:[%s7] sm:$0xff]
      %v280 = vld [vmem:[%s7 + $0x8] sm:$0xff]
      %v281 = vld [vmem:[%s7 + $0x10] sm:$0xff]
      %v282 = vld [vmem:[%s7 + $0x18] sm:$0xff]
      %v284 = vsel %vm112, %v277, 0
      %v287 = vsel %vm112, %v278, 0
      %289 = vmatpush.msra.mxu0 0.0
      %290 = vmatpush.msra.mxu0 0.0
      %291 = vmatpush.msra.mxu0 0.0
      %292 = vmatpush.msra.mxu0 0.0
      %293 = vmatpush.msra.mxu0 0.0
      %294 = vmatpush.msra.mxu0 0.0
      %295 = vmatpush.msra.mxu0 0.0
      %296 = vmatpush.msra.mxu0 0.0
      %297 = vmatpush.msra.mxu0 0.0
      %298 = vmatpush.msra.mxu0 0.0
      %299 = vmatpush.msra.mxu0 0.0
      %300 = vmatpush.msra.mxu0 0.0
      %301 = vmatpush.msra.mxu0 %v282
      %302 = vmatpush.msra.mxu0 %v281
      %303 = vmatpush.msra.mxu0 %v280
      %304 = vmatpush.msra.mxu0 %v279
      %305 = vmatmul.f32.gmra.mxu0 %v284
      %v306 = vpop.f32.mrf.mxu0
      %v307 = vadd.f32 0.0, %v306
      %308 = vmatmul.f32.gmra.mxu0 %v287
      %v309 = vpop.f32.mrf.mxu0
      %v310 = vadd.f32 0.0, %v309
      %311 = vdwg.mxu0
      %v312 = vmax.f32 %v307, 0.0
      %v313 = vmax.f32 %v310, 0.0
      %v314 = vld [vmem:[#allocation5] sm:$0xff]
      %v315 = vld [vmem:[#allocation5 + $0x8] sm:$0x7]
      %v316 = vld [vmem:[%s9] sm:$0xff]
      %v317 = vld [vmem:[%s9 + $0x8] sm:$0xff]
      %v318 = vld [vmem:[%s9 + $0x10] sm:$0xff]
      %v319 = vld [vmem:[%s9 + $0x18] sm:$0xff]
      %v320 = vld [vmem:[%s11] sm:$0x1]
      %v322 = vperm.slane %v320, 0
      %v325 = vsel %vm112, %v312, 0
      %v328 = vsel %vm112, %v313, 0
      %330 = vmatpush.msra.mxu0 0.0
      %331 = vmatpush.msra.mxu0 0.0
      %332 = vmatpush.msra.mxu0 0.0
      %333 = vmatpush.msra.mxu0 0.0
      %334 = vmatpush.msra.mxu0 0.0
      %335 = vmatpush.msra.mxu0 0.0
      %336 = vmatpush.msra.mxu0 0.0
      %337 = vmatpush.msra.mxu0 0.0
      %338 = vmatpush.msra.mxu0 0.0
      %339 = vmatpush.msra.mxu0 0.0
      %340 = vmatpush.msra.mxu0 0.0
      %341 = vmatpush.msra.mxu0 0.0
      %342 = vmatpush.msra.mxu0 %v319
      %343 = vmatpush.msra.mxu0 %v318
      %344 = vmatpush.msra.mxu0 %v317
      %345 = vmatpush.msra.mxu0 %v316
      %346 = vmatmul.f32.gmra.mxu0 %v325
      %v347 = vpop.f32.mrf.mxu0
      %v348 = vadd.f32 %v322, %v347
      %349 = vmatmul.f32.gmra.mxu0 %v328
      %v350 = vpop.f32.mrf.mxu0
      %v351 = vadd.f32 %v322, %v350
      %352 = vdwg.mxu0
      %v353 = vld [vmem:[%s10] sm:$0xff]
      %v354 = vld [vmem:[%s10 + $0x8] sm:$0xff]
      %v355 = vld [vmem:[%s10 + $0x10] sm:$0xff]
      %v356 = vld [vmem:[%s10 + $0x18] sm:$0xff]
      %v357 = vld [vmem:[%s12] sm:$0x1]
      %v359 = vperm.slane %v357, 0
      %v362 = vsel %vm112, %v314, 0
      %v365 = vsel %vm112, %v315, 0
      %367 = vmatpush.msra.mxu0 0.0
      %368 = vmatpush.msra.mxu0 0.0
      %369 = vmatpush.msra.mxu0 0.0
      %370 = vmatpush.msra.mxu0 0.0
      %371 = vmatpush.msra.mxu0 0.0
      %372 = vmatpush.msra.mxu0 0.0
      %373 = vmatpush.msra.mxu0 0.0
      %374 = vmatpush.msra.mxu0 0.0
      %375 = vmatpush.msra.mxu0 0.0
      %376 = vmatpush.msra.mxu0 0.0
      %377 = vmatpush.msra.mxu0 0.0
      %378 = vmatpush.msra.mxu0 0.0
      %379 = vmatpush.msra.mxu0 %v356
      %380 = vmatpush.msra.mxu0 %v355
      %381 = vmatpush.msra.mxu0 %v354
      %382 = vmatpush.msra.mxu0 %v353
      %383 = vmatmul.f32.gmra.mxu0 %v362
      %v384 = vpop.f32.mrf.mxu0
      %v385 = vadd.f32 %v359, %v384
      %386 = vmatmul.f32.gmra.mxu0 %v365
      %v387 = vpop.f32.mrf.mxu0
      %v388 = vadd.f32 %v359, %v387
      %389 = vdwg.mxu0
      %v390 = vadd.f32 %v348, %v385
      %v391 = vadd.f32 %v351, %v388
      %v392 = vxor.u32 %v390, 2147483648
      %v393 = vxor.u32 %v391, 2147483648
      %v394 = vmul.f32 %v392, 1.442695
      %v395 = vpow.pop %v394
      %v396 = vmul.f32 %v393, 1.442695
      %v397 = vpow.pop %v396
      %v398 = vadd.f32 %v395, 1.0
      %v399 = vadd.f32 %v397, 1.0
      %v400 = vrcp.pop %v398
      %v401 = vmul.f32 %v398, %v400
      %v402 = vsub.f32 1.0, %v401
      %v403 = vmul.f32 %v400, %v402
      %v404 = vadd.f32 %v400, %v403
      %vm405 = vweird.f32 %v398
      %vm406 = vweird.f32 %v400
      %vm407 = vmor %vm405, %vm406
      %v408 = vsel %vm407, %v400, %v404
      %v409 = vand.u32 2147483647, %v398
      %vm410 = vcmp.eq.f32.partialorder %v409, 8.507059e+37
      %v411 = vand.u32 %v398, 2147483648
      %v412 = vor.u32 1.1754944e-38, %v411
      %v413 = vsel %vm410, %v412, %v408
      %v414 = vmul.f32 1.0, %v413
      %v415 = vrcp.pop %v399
      %v416 = vmul.f32 %v399, %v415
      %v417 = vsub.f32 1.0, %v416
      %v418 = vmul.f32 %v415, %v417
      %v419 = vadd.f32 %v415, %v418
      %vm420 = vweird.f32 %v399
      %vm421 = vweird.f32 %v415
      %vm422 = vmor %vm420, %vm421
      %v423 = vsel %vm422, %v415, %v419
      %v424 = vand.u32 2147483647, %v399
      %vm425 = vcmp.eq.f32.partialorder %v424, 8.507059e+37
      %v426 = vand.u32 %v399, 2147483648
      %v427 = vor.u32 1.1754944e-38, %v426
      %v428 = vsel %vm425, %v427, %v423
      %v429 = vmul.f32 1.0, %v428
      %432 = vrot.lane.b32.xlu0 %v385, 64
      %v433 = vpop.permute.xlu0 %432
      %434 = vrot.lane.b32.xlu0 %v388, 64
      %v435 = vpop.permute.xlu0 %434
      %v438 = vmul.f32 %v414, %v433
      %v439 = vmul.f32 %v429, %v435
      %442 = vrot.lane.b32.xlu0 %v438, 64
      %v443 = vpop.permute.xlu0 %442
      %444 = vrot.lane.b32.xlu0 %v439, 64
      %v445 = vpop.permute.xlu0 %444
      %v448 = vadd.f32 %v348, %v443
      %v449 = vadd.f32 %v351, %v445
      %v450 = vtanh.pop %v448
      %v451 = vtanh.pop %v449
      %v452 = vsub.f32 1.0, %v414
      %v453 = vsub.f32 1.0, %v429
      %456 = vrot.lane.b32.xlu0 %v450, 96
      %v457 = vpop.permute.xlu0 %456
      %458 = vrot.lane.b32.xlu0 %v451, 96
      %v459 = vpop.permute.xlu0 %458
      %v462 = vmul.f32 %v452, %v457
      %v463 = vmul.f32 %v453, %v459
      %464 = vrot.lane.b32.xlu0 %v314, 32
      %v465 = vpop.permute.xlu0 %464
      %466 = vrot.lane.b32.xlu0 %v315, 32
      %v467 = vpop.permute.xlu0 %466
      %v470 = vmul.f32 %v414, %v465
      %v471 = vmul.f32 %v429, %v467
      %v472 = vadd.f32 %v462, %v470
      %v473 = vadd.f32 %v463, %v471
      %476 = vrot.lane.b32.xlu0 %v472, 96
      %v477 = vpop.permute.xlu0 %476
      %478 = vrot.lane.b32.xlu0 %v473, 96
      %v479 = vpop.permute.xlu0 %478
      %482 = vst.msk [vmem:[#allocation7] sm:$0xff] %vm112, %v477
      %483 = vst.msk [vmem:[#allocation7 + $0x8] sm:$0x7] %vm272, %v479
      %v484 = vld [vmem:[%s13] sm:$0xff]
      %v485 = vld [vmem:[%s13 + $0x8] sm:$0xff]
      %v486 = vld [vmem:[%s13 + $0x10] sm:$0xff]
      %v487 = vld [vmem:[%s13 + $0x18] sm:$0xff]
      %v488 = vsel %vm112, %v477, 0
      %v490 = vsel %vm112, %v479, 0
      %492 = vmatpush.msra.mxu0 0.0
      %493 = vmatpush.msra.mxu0 0.0
      %494 = vmatpush.msra.mxu0 0.0
      %495 = vmatpush.msra.mxu0 0.0
      %496 = vmatpush.msra.mxu0 0.0
      %497 = vmatpush.msra.mxu0 0.0
      %498 = vmatpush.msra.mxu0 0.0
      %499 = vmatpush.msra.mxu0 0.0
      %500 = vmatpush.msra.mxu0 0.0
      %501 = vmatpush.msra.mxu0 0.0
      %502 = vmatpush.msra.mxu0 0.0
      %503 = vmatpush.msra.mxu0 0.0
      %504 = vmatpush.msra.mxu0 %v487
      %505 = vmatpush.msra.mxu0 %v486
      %506 = vmatpush.msra.mxu0 %v485
      %507 = vmatpush.msra.mxu0 %v484
      %508 = vmatmul.f32.gmra.mxu0 %v488
      %v509 = vpop.f32.mrf.mxu0
      %v510 = vadd.f32 0.0, %v509
      %511 = vmatmul.f32.gmra.mxu0 %v490
      %v512 = vpop.f32.mrf.mxu0
      %v513 = vadd.f32 0.0, %v512
      %514 = vdwg.mxu0
      %vm515 = vcmask 7168
      %516 = vst.msk [vmem:[%s15] sm:$0xff] %vm515, %v510
      %vm517 = vcmask 2048
      %518 = vst.msk [vmem:[%s15 + $0x8] sm:$0x7] %vm517, %v513
    $region73: #{tpu_custom_call.1} parent=1 // pred_fallthru
      _
    // Predicated region
    $region74: #{tpu_custom_call.1} parent=1 // pred_check
      _
    $region75: #{tpu_custom_call.1} parent=1 // pred_check_branch
      %520 = sbr.rel (0) target = $region77
    $region76: #{tpu_custom_call.1} parent=1 // pred_region
      %522 = vsyncadd [#allocation4], 0
      %s523 = sshll.u32 [#allocation7], 4
      %s524 = int_to_ptr.vmem [resolvable:$true] %s523
      %s525 = sshll.u32 %s14, 4
      %s526 = int_to_ptr.hbm [resolvable:$true] %s525
      %531 = dma.vmem_to_hbm [thread:$0]  %s524, 256, %s526, [#allocation4], 128, 128, 8
    $region77: #{tpu_custom_call.1} parent=1 // pred_fallthru
      _
    // Predicated region
    $region78: #{tpu_custom_call.1} parent=1 // pred_check
      _
    $region79: #{tpu_custom_call.1} parent=1 // pred_check_branch
      %533 = sbr.rel (0) target = $region81
    $region80: #{tpu_custom_call.1} parent=1 // pred_region
      _
    $region81: #{tpu_custom_call.1} parent=1 // pred_fallthru
      _
    // Predicated region
    $region82: #{tpu_custom_call.1} parent=1 // pred_check
      _
    $region83: #{tpu_custom_call.1} parent=1 // pred_check_branch
      %535 = sbr.rel (0) target = $region85
    $region84: #{tpu_custom_call.1} parent=1 // pred_region
      %537 = dma.done [#allocation4], 256
    $region85: #{tpu_custom_call.1} parent=1 // pred_fallthru
      _
    // Predicated region
    $region86: #{tpu_custom_call.1} parent=1 // pred_check
      _
    $region87: #{tpu_custom_call.1} parent=1 // pred_check_branch
      %539 = sbr.rel (0) target = $region89
    $region88: #{tpu_custom_call.1} parent=1 // pred_region
      _
    $region89: #{tpu_custom_call.1} parent=1 // pred_fallthru
      _
    %540 = vsyncpa [#allocation3], 1
    %541 = vsyncpa [#allocation6], 1
    %542 = vsyncpa [#allocation4], 1

</llo_original>
